<compile_context>
chip_gen: v6e
topology: v6e:2x2x1
jax: 0.10.0
libtpu: 0.0.40
codegen_flags: <defaults>
</compile_context>

<pallas_src>
import functools
import math

import jax
import jax.numpy as jnp
from jax.experimental import pallas as pl
from jax.experimental.pallas import tpu as pltpu


def _tpu_generation():
    """Best-effort TPU generation from device_kind; 0 == unknown (conservative defaults)."""
    try:
        kind = jax.devices()[0].device_kind.lower()
    except Exception:
        return 0
    if "7" in kind:
        return 7
    if "v6" in kind or "6e" in kind:
        return 6
    if "v5" in kind:
        return 5
    if "v4" in kind:
        return 4
    return 0


def _clamp_q_math(x, min_val, max_val, timestep_f, inv_t, compute_in_f32):
    """Plain-jnp version: small-tensor fallback, misaligned tail, and reference math."""
    orig_dtype = x.dtype
    if compute_in_f32 and x.dtype != jnp.float32:
        x = x.astype(jnp.float32)
    x = jnp.clip(x, min_val, max_val)
    x = jnp.floor(x * timestep_f)
    x = x * inv_t if inv_t is not None else x / timestep_f
    return x.astype(orig_dtype)


def _clamp_q_kernel(x_ref, o_ref, *, min_val, max_val, timestep_f, inv_t, compute_in_f32):
    x = x_ref[...]
    # f32 upcast only where needed (v5e has no bf16 VALU; fp16 / non-pow2 T / int inputs).
    if compute_in_f32 and x.dtype != jnp.float32:
        x = x.astype(jnp.float32)
    x = jnp.clip(x, min_val, max_val)          # torch.clamp
    x = jnp.floor(x * timestep_f)              # floor(x * T)
    if inv_t is not None:
        x = x * inv_t                          # exact for power-of-two T; plain VALU mul
    else:
        x = x / timestep_f                     # keep exact division otherwise
    o_ref[...] = x.astype(o_ref.dtype)


def clamp_q(x, min_val=0.0, max_val=1.0, timestep=2, *,
            force_pallas=False, min_pallas_bytes=256 << 10):
    """Forward pass of Clamp_q_: floor(clamp(x, min, max) * T) / T. Any shape / float dtype."""
    orig_shape = x.shape
    orig_dtype = jnp.dtype(x.dtype)
    n = x.size
    itemsize = orig_dtype.itemsize

    t = float(timestep)
    mant, _ = math.frexp(t)
    inv_t = (1.0 / t) if mant == 0.5 else None     # reciprocal only when exact (power of two)

    gen = _tpu_generation()

    # Compute-dtype policy.
    if not jnp.issubdtype(orig_dtype, jnp.floating):
        # TODO(synk): integer inputs round-trip through f32 and truncate on the cast back;
        # the PyTorch reference operates on float tensors.
        compute_in_f32 = True
    elif itemsize >= 4:
        compute_in_f32 = False
    elif orig_dtype == jnp.dtype(jnp.bfloat16) and gen >= 6 and inv_t is not None:
        # bf16 VALU on v6e/v7x; quantization levels k/T (pow-2 T) are exactly representable.
        compute_in_f32 = False
    else:
        compute_in_f32 = True                      # fp16, bf16-on-v5e, or non-pow2 timestep

    math_fn = functools.partial(
        _clamp_q_math, min_val=float(min_val), max_val=float(max_val),
        timestep_f=t, inv_t=inv_t, compute_in_f32=compute_in_f32)

    # Small-tensor fallback: pallas launch + serialized single-block DMA is pure overhead
    # below a few hundred KiB; an XLA-fused elementwise op wins there.
    if n == 0 or (not force_pallas and n * itemsize < min_pallas_bytes):
        return math_fn(x)

    # ---- lane-aligned main slab + (tiny) jnp tail -------------------------------------
    x_flat = jnp.ravel(x)
    rem = n % 128
    n_main = n - rem
    if n_main == 0:                                # everything is "tail" -> plain jnp
        return math_fn(x)

    # Widest lane count that exactly divides the aligned prefix -> longer contiguous
    # DMA bursts, fewer vld/vst slots per byte, fewer grid steps.
    lanes = 128
    for cand in (1024, 512, 256):
        if n_main % cand == 0:
            lanes = cand
            break
    rows = n_main // lanes
    x2d = (x_flat[:n_main] if rem else x_flat).reshape(rows, lanes)

    # Packed sublane count: 8 (32-bit), 16 (16-bit), 32 (8-bit).
    sublane = max(8, 32 // itemsize)

    # Generation-aware block sizing: at 3.2 TB/s (v7x) the ~0.35us per-grid-step overhead
    # is a ~25% tax on 2 MiB blocks, so use 8 MiB there; 4 MiB on v6e; 2 MiB elsewhere.
    if gen >= 7:
        block_bytes, min_steps = 8 << 20, 8        # keep several steps per TC (2 TCs on v7x)
    elif gen == 6:
        block_bytes, min_steps = 4 << 20, 4
    else:
        block_bytes, min_steps = 2 << 20, 4

    block_elems = max(lanes * sublane, block_bytes // itemsize)
    vmem_tile_rows = max(sublane, (block_elems // lanes) // sublane * sublane)

    if rows >= min_steps * sublane:
        # Cap tile size both by the VMEM budget and by "at least min_steps grid steps"
        # so DMA in/out overlaps and the parallel axis can be sharded across cores.
        steps_tile_rows = max(sublane, (rows // min_steps) // sublane * sublane)
        tile_rows = min(vmem_tile_rows, steps_tile_rows)
        grid = (pl.cdiv(rows, tile_rows),)         # boundary block handled by Pallas masking
    elif rows <= vmem_tile_rows:
        tile_rows = rows                           # single full-dims block (always legal)
        grid = (1,)
    else:
        tile_rows = vmem_tile_rows
        grid = (pl.cdiv(rows, tile_rows),)

    kernel = functools.partial(
        _clamp_q_kernel, min_val=float(min_val), max_val=float(max_val),
        timestep_f=t, inv_t=inv_t, compute_in_f32=compute_in_f32)

    # Double-buffered input + output = 4 tiles resident; leave headroom for internal scratch.
    vmem_limit = int(4 * tile_rows * lanes * itemsize + (8 << 20))

    out2d = pl.pallas_call(
        kernel,
        out_shape=jax.ShapeDtypeStruct((rows, lanes), orig_dtype),
        grid_spec=pltpu.PrefetchScalarGridSpec(
            num_scalar_prefetch=0,
            grid=grid,
            in_specs=[pl.BlockSpec((tile_rows, lanes), lambda i: (i, 0))],
            out_specs=pl.BlockSpec((tile_rows, lanes), lambda i: (i, 0)),
        ),
        compiler_params=pltpu.CompilerParams(
            dimension_semantics=("parallel",),     # megacore-shardable on v7x
            vmem_limit_bytes=vmem_limit),
        cost_estimate=pl.CostEstimate(
            flops=4 * n_main,
            transcendentals=0,
            bytes_accessed=2 * n_main * itemsize),
    )(x2d)

    out_main = out2d.reshape(-1)
    if rem == 0:
        return out_main.reshape(orig_shape)
    # <128-element tail handled in plain jnp (negligible work), then stitched back.
    tail = math_fn(x_flat[n_main:])
    return jnp.concatenate([out_main, tail]).reshape(orig_shape)


if __name__ == "__main__":
    root = jax.random.PRNGKey(0)
    k1, k2 = jax.random.split(root)

    def ref_fn(x, lo=0.0, hi=1.0, T=2.0):
        return jnp.floor(jnp.clip(x, lo, hi) * T) / T

    # (1) lane-aligned NCHW activation (VGG-style), forced through the Pallas path.
    x1 = jax.random.normal(k1, (2, 4, 16, 16), dtype=jnp.float32)
    o1 = jax.block_until_ready(clamp_q(x1, 0.0, 1.0, 2, force_pallas=True))
    assert o1.shape == x1.shape and o1.dtype == x1.dtype
    assert jnp.allclose(o1, ref_fn(x1)), "mismatch vs reference (aligned path)"

    # (2) non-128-aligned size: aligned prefix through the kernel + tiny jnp tail.
    x2 = jax.random.normal(k2, (5, 131), dtype=jnp.float32)
    o2 = jax.block_until_ready(clamp_q(x2, 0.0, 1.0, 2, force_pallas=True))
    assert o2.shape == x2.shape and o2.dtype == x2.dtype
    assert jnp.allclose(o2, ref_fn(x2)), "mismatch vs reference (misaligned path)"

    # (3) small-tensor auto fallback (plain jnp, no pallas_call).
    o3 = jax.block_until_ready(clamp_q(x1, 0.0, 1.0, 2))
    assert jnp.allclose(o3, ref_fn(x1)), "mismatch vs reference (fallback path)"

    print("KERNEL_OK")
</pallas_src>

<mosaic_0001>
module attributes {stable_mosaic.version = 11 : i64} {
  func.func @_clamp_q_kernel(%arg0: i32, %arg1: memref<2x1024xf32, #tpu.memory_space<vmem>>, %arg2: memref<2x1024xf32, #tpu.memory_space<vmem>>) attributes {dimension_semantics = [#tpu.dimension_semantics<parallel>], iteration_bounds = array<i64: 1>, scalar_prefetch = 0 : i64, scratch_operands = 0 : i64, tpu.core_type = #tpu.core_type<tc>, window_params = [{transform_indices = @transform_0, window_bounds = array<i64: 2, 1024>}, {transform_indices = @transform_1, window_bounds = array<i64: 2, 1024>}]} {
    %c0 = arith.constant 0 : index
    %c0_0 = arith.constant 0 : index
    %0 = vector.load %arg1[%c0, %c0_0] : memref<2x1024xf32, #tpu.memory_space<vmem>>, vector<2x1024xf32>
    %cst = arith.constant 0.000000e+00 : f32
    %cst_1 = arith.constant 1.000000e+00 : f32
    %1 = vector.broadcast %cst : f32 to vector<2x1024xf32>
    %2 = arith.maximumf %1, %0 : vector<2x1024xf32>
    %3 = vector.broadcast %cst_1 : f32 to vector<2x1024xf32>
    %4 = arith.minimumf %3, %2 : vector<2x1024xf32>
    %cst_2 = arith.constant 2.000000e+00 : f32
    %5 = vector.broadcast %cst_2 : f32 to vector<2x1024xf32>
    %6 = arith.mulf %4, %5 : vector<2x1024xf32>
    %7 = math.floor %6 : vector<2x1024xf32>
    %cst_3 = arith.constant 5.000000e-01 : f32
    %8 = vector.broadcast %cst_3 : f32 to vector<2x1024xf32>
    %9 = arith.mulf %7, %8 : vector<2x1024xf32>
    %c0_4 = arith.constant 0 : index
    %c0_5 = arith.constant 0 : index
    %10 = vector.load %arg2[%c0_4, %c0_5] : memref<2x1024xf32, #tpu.memory_space<vmem>>, vector<2x1024xf32>
    tpu.vector_store %arg2[%c0_4, %c0_5], %9 {strides = array<i32>} : memref<2x1024xf32, #tpu.memory_space<vmem>>, vector<2x1024xf32>,
    return
  }
  func.func @transform_0(%arg0: i32) -> (i32, i32) {
    %c0_i32 = arith.constant 0 : i32
    %c0_i32_0 = arith.constant 0 : i32
    return %arg0, %c0_i32 : i32, i32
  }
  func.func @transform_1(%arg0: i32) -> (i32, i32) {
    %c0_i32 = arith.constant 0 : i32
    %c0_i32_0 = arith.constant 0 : i32
    return %arg0, %c0_i32 : i32, i32
  }
}

</mosaic_0001>

<llo_original>
// kernel: tpu_custom_call.1
$region0: #{tpu_custom_call.1}
  #allocation0 [shape = 'u32[]', space=smem, size = 0x4, offset = 0x4, fixed_abs, tag = 'smem constant byte address 0x4 - core index']
  #allocation1 [shape = 'u32[144,128]{1,0:T(1,128)}', space=vmem, size = 0x12000, scoped, tag = 'internal scratch']
  %s0 = inlined_call_operand.hbm [shape: f32[2,1024], index: 0, kind: input, shape index: {}]
  %s1 = inlined_call_operand.hbm [shape: f32[2,1024], index: 1, kind: output, shape index: {}]
  %s2 = sld [smem:[#allocation0]]
  $region18: #{tpu_custom_call.1} parent=0
    _
  %s4 = ssub.s32 1, %s2
  %s5 = scalar_select 0, %s4, %s2
  $region1: #{tpu_custom_call.1} parent=0
    #allocation2 [shape = 'u8[8192]{0}', space=vmem, size = 0x2000, scoped, tag = 'input window, operand 0, single buffered']
    #allocation3 [shape = 's32[1]{0}', space=sflag, size = 0x4, scoped, tag = 'scoped memory for tpu_custom_call.1']
    #allocation4 [shape = 's32[1]{0}', space=sflag, size = 0x4, scoped, tag = 'scoped memory for tpu_custom_call.1']
    #allocation5 [shape = 'u8[8192]{0}', space=vmem, size = 0x2000, scoped, tag = 'output window, operand 0, single buffered']
    %6 = vsyncpa [#allocation3], 0
    %7 = vsyncpa [#allocation4], 0
    // Predicated region
    $region2: #{tpu_custom_call.1} parent=1 // pred_check
      _
    $region3: #{tpu_custom_call.1} parent=1 // pred_check_branch
      %9 = sbr.rel (0) target = $region5
    $region4: #{tpu_custom_call.1} parent=1 // pred_region
      %s11 = ssub.s32 256, 256
      %12 = vsyncadd [#allocation3], %s11
      %s14 = sshll.u32 [#allocation2], 4
      %s15 = int_to_ptr.vmem [resolvable:$true] %s14
      %17 = dma.hbm_to_vmem [thread:$0]  %s0, 256, %s15, [#allocation3]
    $region5: #{tpu_custom_call.1} parent=1 // pred_fallthru
      _
    // Predicated region
    $region6: #{tpu_custom_call.1} parent=1 // pred_check
      _
    $region7: #{tpu_custom_call.1} parent=1 // pred_check_branch
      %19 = sbr.rel (0) target = $region9
    $region8: #{tpu_custom_call.1} parent=1 // pred_region
      %20 = dma.done [#allocation3], 256
    $region9: #{tpu_custom_call.1} parent=1 // pred_fallthru
      _
    %v21 = vld [vmem:[#allocation2] sm:$0xff]
    %v22 = vld [vmem:[#allocation2 + $0x8] sm:$0xff]
    %v23 = vmax.f32 %v21, 0.0
    %v24 = vmax.f32 %v22, 0.0
    %v25 = vmin.f32 %v23, 1.0
    %v26 = vmin.f32 %v24, 1.0
    %v27 = vmul.f32 %v25, 2.0
    %v28 = vmul.f32 %v26, 2.0
    %v29 = vfloor.f32 %v27
    %v30 = vfloor.f32 %v28
    %v31 = vmul.f32 %v29, 0.5
    %v32 = vmul.f32 %v30, 0.5
    %33 = vst [vmem:[#allocation5] sm:$0xff] %v31
    %34 = vst [vmem:[#allocation5 + $0x8] sm:$0xff] %v32
    // Predicated region
    $region10: #{tpu_custom_call.1} parent=1 // pred_check
      _
    $region11: #{tpu_custom_call.1} parent=1 // pred_check_branch
      %36 = sbr.rel (0) target = $region13
    $region12: #{tpu_custom_call.1} parent=1 // pred_region
      %s38 = ssub.s32 256, 256
      %39 = vsyncadd [#allocation4], %s38
      %s41 = sshll.u32 [#allocation5], 4
      %s42 = int_to_ptr.vmem [resolvable:$true] %s41
      %44 = dma.vmem_to_hbm [thread:$0]  %s42, 256, %s1, [#allocation4]
    $region13: #{tpu_custom_call.1} parent=1 // pred_fallthru
      _
    // Predicated region
    $region14: #{tpu_custom_call.1} parent=1 // pred_check
      _
    $region15: #{tpu_custom_call.1} parent=1 // pred_check_branch
      %46 = sbr.rel (0) target = $region17
    $region16: #{tpu_custom_call.1} parent=1 // pred_region
      %47 = dma.done [#allocation4], 256
    $region17: #{tpu_custom_call.1} parent=1 // pred_fallthru
      _
    %48 = vsyncpa [#allocation3], 1
    %49 = vsyncpa [#allocation4], 1

</llo_original>
